<compile_context>
chip_gen: v5e
topology: v5e:2x2
jax: 0.10.0
libtpu: 0.0.40
codegen_flags: <defaults>
</compile_context>

<pallas_src>
import functools
import math

import jax
import jax.numpy as jnp
from jax.experimental import pallas as pl
from jax.experimental.pallas import tpu as pltpu


def _eca_kernel_size(c, b=1, gamma=2):
    t = int(abs((math.log(c, 2) + b) / gamma))
    return t if t % 2 else t + 1


def _eca_kernel(x_ref, w_ref, o_ref, acc_ref, *, hw, hw_block, mask_hw):
    # x_ref  : (TB, C, HW_BLOCK) input tile (f32 or bf16), streamed from HBM
    # w_ref  : (k,) Conv1d weights in SMEM
    # o_ref  : (TB, C) channel-attention weights (f32)
    # acc_ref: (TB, C) f32 spatial-sum accumulator (lives across hw grid steps)
    tb, c, _ = x_ref.shape
    k = w_ref.shape[0]
    pad = k // 2
    s = pl.program_id(1)
    n_s = pl.num_programs(1)

    @pl.when(s == 0)
    def _():
        acc_ref[...] = jnp.zeros_like(acc_ref)

    x = x_ref[...].astype(jnp.float32)
    if mask_hw:
        # Last spatial block may run past the true HW extent; zero those lanes
        # so they cannot pollute the pooled sum.
        pos = s * hw_block + jax.lax.broadcasted_iota(jnp.int32, x.shape, 2)
        x = jnp.where(pos < hw, x, 0.0)
    acc_ref[...] += jnp.sum(x, axis=-1)

    @pl.when(s == n_s - 1)
    def _():
        pooled = acc_ref[...] * (1.0 / hw)  # true-HW mean (masked lanes added 0)
        # 1-D 'same' convolution along the channel axis, zero padded, as k
        # shifted multiply-adds (nn.Conv1d cross-correlation):
        #   y[i] = sum_t w[t] * pooled[i + t - pad]
        # Tiny epilogue: runs once per output block, negligible vs. DMA time.
        if pad > 0:
            zpad = jnp.zeros((tb, pad), jnp.float32)
            padded = jnp.concatenate([zpad, pooled, zpad], axis=1)
        else:
            padded = pooled
        acc = w_ref[0] * padded[:, 0:c]
        for t in range(1, k):
            acc = acc + w_ref[t] * padded[:, t:t + c]
        o_ref[...] = jax.nn.sigmoid(acc).astype(o_ref.dtype)


def _tpu_vmem_budget_and_megacore():
    """Best-effort per-core VMEM capacity and 'has 2 TensorCores' (v7x) flag."""
    kind = ""
    try:
        kind = jax.devices()[0].device_kind.lower()
    except Exception:
        pass
    is_v7 = "v7" in kind
    try:
        vmem_cap = int(pltpu.get_tpu_info().vmem_capacity_bytes)
    except Exception:
        vmem_cap = (64 << 20) if is_v7 else (128 << 20)
    return vmem_cap, is_v7


def efficient_channel_attention(x, conv_weight, *, batch_tile=None, hw_tile=None):
    """x: (N, C, H, W) float32/bfloat16; conv_weight: (k,) float32 (the squeezed
    nn.Conv1d weight). Returns (N, C, 1, 1) attention map (f32)."""
    n, c, h, w = x.shape
    hw = h * w
    k = int(conv_weight.shape[0])
    x_flat = x.reshape(n, c, hw)  # no padding: kernel reads exactly N*C*HW bytes
    itemsize = jnp.dtype(x.dtype).itemsize

    vmem_cap, is_v7 = _tpu_vmem_budget_and_megacore()
    # Leave headroom for Mosaic internal scratch / output buffers; cap sensibly.
    vmem_budget = min(max(16 << 20, vmem_cap - (12 << 20)), 100 << 20)
    # Input-tile target: large enough to amortize ~0.35us/step, small enough
    # that the double-buffered pair fits comfortably inside the budget.
    target_tile_bytes = min(16 << 20, vmem_budget // 3)

    # --- spatial (reduction) tiling ------------------------------------------
    row_bytes = c * hw * itemsize  # one batch element, full spatial extent
    if hw_tile is not None:
        hw_block = int(hw_tile)
    elif row_bytes <= target_tile_bytes or hw <= 128:
        hw_block = hw  # whole spatial extent per step
    else:
        hw_block = (target_tile_bytes // max(1, c * itemsize)) // 128 * 128
        hw_block = max(128, min(hw_block, (hw // 128) * 128))
    assert hw_block == hw or hw_block % 128 == 0, "hw tile must be 128-multiple or full"
    n_hw = -(-hw // hw_block)
    mask_hw = (hw % hw_block) != 0

    # --- batch tiling ---------------------------------------------------------
    tile_block_bytes = c * hw_block * itemsize
    if batch_tile is not None:
        tb = max(1, min(n, int(batch_tile)))
    else:
        tb = max(1, min(n, target_tile_bytes // max(1, tile_block_bytes)))
        if is_v7 and n >= 2:
            # Keep >= 2 batch grid steps so both v7x TensorCores get work.
            tb = min(tb, -(-n // 2))
    n_b = -(-n // tb)  # cdiv: partial last batch block is masked on store

    tile_bytes = tb * tile_block_bytes
    vmem_limit = int(min(vmem_budget, max(32 << 20, 2 * tile_bytes + (8 << 20))))

    cost = pl.CostEstimate(
        flops=int(n * c * hw + 2 * n * c * k),
        transcendentals=int(n * c),
        bytes_accessed=int(n * c * hw * itemsize + n * c * 4 + k * 4),
    )

    out = pl.pallas_call(
        functools.partial(_eca_kernel, hw=hw, hw_block=hw_block, mask_hw=mask_hw),
        out_shape=jax.ShapeDtypeStruct((n, c), jnp.float32),
        grid_spec=pltpu.PrefetchScalarGridSpec(
            num_scalar_prefetch=0,
            grid=(n_b, n_hw),
            in_specs=[
                pl.BlockSpec((tb, c, hw_block), lambda i, s: (i, 0, s)),
                pl.BlockSpec(memory_space=pltpu.MemorySpace.SMEM),  # (k,) weights
            ],
            out_specs=pl.BlockSpec((tb, c), lambda i, s: (i, 0)),
            scratch_shapes=[pltpu.VMEM((tb, c), jnp.float32)],
        ),
        compiler_params=pltpu.CompilerParams(
            dimension_semantics=("parallel", "arbitrary"),
            vmem_limit_bytes=vmem_limit,
        ),
        cost_estimate=cost,
    )(x_flat, conv_weight.astype(jnp.float32))

    return out.reshape(n, c, 1, 1)


def _reference(x, conv_weight):
    """Pure-JAX reference mirroring the PyTorch forward (Conv1d = cross-corr)."""
    n, c, h, w = x.shape
    pooled = jnp.mean(x.astype(jnp.float32), axis=(2, 3))  # (N, C)
    k = conv_weight.shape[0]
    pad = k // 2
    padded = jnp.pad(pooled, ((0, 0), (pad, pad)))
    out = jnp.zeros((n, c), jnp.float32)
    for i in range(k):
        out = out + conv_weight[i] * padded[:, i:i + c]
    return jax.nn.sigmoid(out).reshape(n, c, 1, 1)


if __name__ == "__main__":
    key = jax.random.PRNGKey(0)

    # Case 1: C=16 -> k=3 (module's kernel-size rule), HW=256.
    N, C, H, W = 2, 16, 16, 16
    k = _eca_kernel_size(C)                      # = 3
    kx, kw, key = jax.random.split(key, 3)
    x = jax.random.normal(kx, (N, C, H, W), dtype=jnp.float32)
    conv_weight = (jax.random.uniform(kw, (k,), dtype=jnp.float32) - 0.5) * 2.0

    out = jax.block_until_ready(efficient_channel_attention(x, conv_weight))
    ref = _reference(x, conv_weight)
    assert out.shape == (N, C, 1, 1)
    assert jnp.allclose(out, ref, atol=1e-5, rtol=1e-5), (
        f"max abs err {float(jnp.max(jnp.abs(out - ref)))}")

    # Case 2: C=128 -> k=5; small HW=64 streamed unpadded (no wrapper pad).
    N2, C2, H2, W2 = 4, 128, 8, 8
    k2 = _eca_kernel_size(C2)                    # = 5
    kx2, kw2, key = jax.random.split(key, 3)
    x2 = jax.random.normal(kx2, (N2, C2, H2, W2), dtype=jnp.float32)
    w2 = (jax.random.uniform(kw2, (k2,), dtype=jnp.float32) - 0.5) * 2.0

    out2 = jax.block_until_ready(efficient_channel_attention(x2, w2))
    ref2 = _reference(x2, w2)
    assert out2.shape == (N2, C2, 1, 1)
    assert jnp.allclose(out2, ref2, atol=1e-5, rtol=1e-5), (
        f"max abs err {float(jnp.max(jnp.abs(out2 - ref2)))}")

    # Case 3: exercise the spatial-reduction axis + masked partial HW tile
    # (HW=400 with hw_tile=128 -> 4 steps, last one masked) and a partial
    # (cdiv) batch block (N=3, batch_tile=2).
    N3, C3, H3, W3 = 3, 8, 20, 20
    k3 = _eca_kernel_size(C3)                    # = 3
    kx3, kw3 = jax.random.split(key)
    x3 = jax.random.normal(kx3, (N3, C3, H3, W3), dtype=jnp.float32)
    w3 = (jax.random.uniform(kw3, (k3,), dtype=jnp.float32) - 0.5) * 2.0

    out3 = jax.block_until_ready(
        efficient_channel_attention(x3, w3, batch_tile=2, hw_tile=128))
    ref3 = _reference(x3, w3)
    assert out3.shape == (N3, C3, 1, 1)
    assert jnp.allclose(out3, ref3, atol=1e-5, rtol=1e-5), (
        f"max abs err {float(jnp.max(jnp.abs(out3 - ref3)))}")

    print("KERNEL_OK")
</pallas_src>

<mosaic_0001>
module attributes {stable_mosaic.version = 11 : i64} {
  func.func @_eca_kernel(%arg0: i32, %arg1: i32, %arg2: memref<2x16x256xf32, #tpu.memory_space<vmem>>, %arg3: memref<3xf32, #tpu.memory_space<smem>>, %arg4: memref<2x16xf32, #tpu.memory_space<vmem>>, %arg5: memref<2x16xf32, #tpu.memory_space<vmem>>) attributes {dimension_semantics = [#tpu.dimension_semantics<parallel>, #tpu.dimension_semantics<arbitrary>], iteration_bounds = array<i64: 1, 1>, scalar_prefetch = 0 : i64, scratch_operands = 1 : i64, tpu.core_type = #tpu.core_type<tc>, window_params = [{transform_indices = @transform_0, window_bounds = array<i64: 2, 16, 256>}, {transform_indices = @transform_1, window_bounds = array<i64: 3>}, {transform_indices = @transform_2, window_bounds = array<i64: 2, 16>}]} {
    %c0_i32 = arith.constant 0 : i32
    %0 = arith.cmpi eq, %arg1, %c0_i32 : i32
    %1 = arith.extui %0 : i1 to i32
    %c0_i32_0 = arith.constant 0 : i32
    %2 = arith.cmpi ne, %1, %c0_i32_0 : i32
    scf.if %2 {
      %cst_9 = arith.constant 0.000000e+00 : f32
      %11 = vector.broadcast %cst_9 : f32 to vector<2x16xf32>
      %c0_10 = arith.constant 0 : index
      %c0_11 = arith.constant 0 : index
      %12 = vector.load %arg5[%c0_10, %c0_11] : memref<2x16xf32, #tpu.memory_space<vmem>>, vector<2x16xf32>
      tpu.vector_store %arg5[%c0_10, %c0_11], %11 {strides = array<i32>} : memref<2x16xf32, #tpu.memory_space<vmem>>, vector<2x16xf32>,
    } else {
    }
    %c0 = arith.constant 0 : index
    %c0_1 = arith.constant 0 : index
    %c0_2 = arith.constant 0 : index
    %3 = vector.load %arg2[%c0, %c0_1, %c0_2] : memref<2x16x256xf32, #tpu.memory_space<vmem>>, vector<2x16x256xf32>
    %c0_3 = arith.constant 0 : index
    %c0_4 = arith.constant 0 : index
    %4 = vector.load %arg5[%c0_3, %c0_4] : memref<2x16xf32, #tpu.memory_space<vmem>>, vector<2x16xf32>
    %cst = arith.constant dense<0.000000e+00> : vector<2x16xf32>
    %5 = vector.multi_reduction <add>, %3, %cst [2] : vector<2x16x256xf32> to vector<2x16xf32>
    %6 = arith.addf %4, %5 : vector<2x16xf32>
    %c0_5 = arith.constant 0 : index
    %c0_6 = arith.constant 0 : index
    %7 = vector.load %arg5[%c0_5, %c0_6] : memref<2x16xf32, #tpu.memory_space<vmem>>, vector<2x16xf32>
    tpu.vector_store %arg5[%c0_5, %c0_6], %6 {strides = array<i32>} : memref<2x16xf32, #tpu.memory_space<vmem>>, vector<2x16xf32>,
    %c0_i32_7 = arith.constant 0 : i32
    %8 = arith.cmpi eq, %arg1, %c0_i32_7 : i32
    %9 = arith.extui %8 : i1 to i32
    %c0_i32_8 = arith.constant 0 : i32
    %10 = arith.cmpi ne, %9, %c0_i32_8 : i32
    scf.if %10 {
      %c0_9 = arith.constant 0 : index
      %c0_10 = arith.constant 0 : index
      %11 = vector.load %arg5[%c0_9, %c0_10] : memref<2x16xf32, #tpu.memory_space<vmem>>, vector<2x16xf32>
      %cst_11 = arith.constant 3.906250e-03 : f32
      %12 = vector.broadcast %cst_11 : f32 to vector<2x16xf32>
      %13 = arith.mulf %11, %12 : vector<2x16xf32>
      %cst_12 = arith.constant 0.000000e+00 : f32
      %14 = vector.broadcast %cst_12 : f32 to vector<2x1xf32>
      %15 = tpu.concatenate %14, %13, %14 in 1 : vector<2x1xf32>, vector<2x16xf32>, vector<2x1xf32> -> vector<2x18xf32>
      %c0_13 = arith.constant 0 : index
      %16 = memref.load %arg3[%c0_13] : memref<3xf32, #tpu.memory_space<smem>>
      %17 = vector.extract_strided_slice %15 {offsets = [0, 0], sizes = [2, 16], strides = [1, 1]} : vector<2x18xf32> to vector<2x16xf32>
      %18 = vector.broadcast %16 : f32 to vector<2x16xf32>
      %19 = arith.mulf %18, %17 : vector<2x16xf32>
      %c1 = arith.constant 1 : index
      %20 = memref.load %arg3[%c1] : memref<3xf32, #tpu.memory_space<smem>>
      %21 = vector.extract_strided_slice %15 {offsets = [0, 1], sizes = [2, 16], strides = [1, 1]} : vector<2x18xf32> to vector<2x16xf32>
      %22 = vector.broadcast %20 : f32 to vector<2x16xf32>
      %23 = arith.mulf %22, %21 : vector<2x16xf32>
      %24 = arith.addf %19, %23 : vector<2x16xf32>
      %c2 = arith.constant 2 : index
      %25 = memref.load %arg3[%c2] : memref<3xf32, #tpu.memory_space<smem>>
      %26 = vector.extract_strided_slice %15 {offsets = [0, 2], sizes = [2, 16], strides = [1, 1]} : vector<2x18xf32> to vector<2x16xf32>
      %27 = vector.broadcast %25 : f32 to vector<2x16xf32>
      %28 = arith.mulf %27, %26 : vector<2x16xf32>
      %29 = arith.addf %24, %28 : vector<2x16xf32>
      %30 = arith.negf %29 : vector<2x16xf32>
      %31 = math.exp %30 : vector<2x16xf32>
      %cst_14 = arith.constant 1.000000e+00 : f32
      %32 = vector.broadcast %cst_14 : f32 to vector<2x16xf32>
      %33 = arith.addf %32, %31 : vector<2x16xf32>
      %34 = arith.divf %32, %33 : vector<2x16xf32>
      %c0_15 = arith.constant 0 : index
      %c0_16 = arith.constant 0 : index
      %35 = vector.load %arg4[%c0_15, %c0_16] : memref<2x16xf32, #tpu.memory_space<vmem>>, vector<2x16xf32>
      tpu.vector_store %arg4[%c0_15, %c0_16], %34 {strides = array<i32>} : memref<2x16xf32, #tpu.memory_space<vmem>>, vector<2x16xf32>,
    } else {
    }
    return
  }
  func.func @transform_0(%arg0: i32, %arg1: i32) -> (i32, i32, i32) {
    %c0_i32 = arith.constant 0 : i32
    %c0_i32_0 = arith.constant 0 : i32
    return %arg0, %c0_i32, %arg1 : i32, i32, i32
  }
  func.func @transform_1(%arg0: i32, %arg1: i32) -> i32 {
    %c0_i32 = arith.constant 0 : i32
    %c0_i32_0 = arith.constant 0 : i32
    return %c0_i32 : i32
  }
  func.func @transform_2(%arg0: i32, %arg1: i32) -> (i32, i32) {
    %c0_i32 = arith.constant 0 : i32
    %c0_i32_0 = arith.constant 0 : i32
    return %arg0, %c0_i32 : i32, i32
  }
}

</mosaic_0001>

<llo_original>
// kernel: tpu_custom_call.1
$region0: #{tpu_custom_call.1}
  #allocation0 [shape = 'u32[]', space=smem, size = 0x4, offset = 0x4, fixed_abs, tag = 'smem constant byte address 0x4 - core index']
  #allocation1 [shape = 'u32[72,128]{1,0:T(1,128)}', space=vmem, size = 0x9000, scoped, tag = 'internal scratch']
  #allocation2 [shape = 'f32[2,16]{1,0:T(2,128)}', space=vmem, size = 0x400, scoped, tag = 'scratch operand']
  %s0 = inlined_call_operand.hbm [shape: f32[2,16,256], index: 0, kind: input, shape index: {}]
  %s1 = inlined_call_operand.hbm [shape: f32[3], index: 1, kind: input, shape index: {}]
  %s2 = inlined_call_operand.hbm [shape: f32[2,16], index: 2, kind: output, shape index: {}]
  %s3 = sld [smem:[#allocation0]]
  $region34: #{tpu_custom_call.1} parent=0
    _
  %s5 = ssub.s32 1, %s3
  %s6 = scalar_select 0, %s5, %s3
  $region1: #{tpu_custom_call.1} parent=0
    #allocation3 [shape = 'u8[32768]{0}', space=vmem, size = 0x8000, scoped, tag = 'input window, operand 0, single buffered']
    #allocation4 [shape = 's32[1]{0}', space=sflag, size = 0x4, scoped, tag = 'scoped memory for tpu_custom_call.1']
    #allocation5 [shape = 's32[1]{0}', space=sflag, size = 0x4, scoped, tag = 'scoped memory for tpu_custom_call.1']
    #allocation6 [shape = 's32[1]{0}', space=sflag, size = 0x4, scoped, tag = 'scoped memory for tpu_custom_call.1']
    #allocation7 [shape = 'u8[512]{0}', space=smem, size = 0x200, scoped, tag = 'input window, operand 1, single buffered']
    #allocation8 [shape = 'u8[1024]{0}', space=vmem, size = 0x400, scoped, tag = 'output window, operand 0, single buffered']
    %7 = vsyncpa [#allocation4], 0
    %8 = vsyncpa [#allocation6], 0
    %9 = vsyncpa [#allocation5], 0
    // Predicated region
    $region2: #{tpu_custom_call.1} parent=1 // pred_check
      _
    $region3: #{tpu_custom_call.1} parent=1 // pred_check_branch
      %11 = sbr.rel (0) target = $region5
    $region4: #{tpu_custom_call.1} parent=1 // pred_region
      %13 = vsyncadd [#allocation4], 0
      %s14 = sshll.u32 %s0, 4
      %s15 = int_to_ptr.hbm [resolvable:$true] %s14
      %s16 = sshll.u32 [#allocation3], 4
      %s17 = int_to_ptr.vmem [resolvable:$true] %s16
      %22 = dma.hbm_to_vmem [thread:$0]  %s15, 1024, %s17, [#allocation4], 256, 256, 16
    $region5: #{tpu_custom_call.1} parent=1 // pred_fallthru
      _
    // Predicated region
    $region6: #{tpu_custom_call.1} parent=1 // pred_check
      _
    $region7: #{tpu_custom_call.1} parent=1 // pred_check_branch
      %24 = sbr.rel (0) target = $region9
    $region8: #{tpu_custom_call.1} parent=1 // pred_region
      %26 = vsyncadd [#allocation6], 0
      %s28 = sshll.u32 %s1, 4
      %s29 = int_to_ptr.hbm [resolvable:$true] %s28
      %31 = dma.hbm_to_smem %s29, 16, [#allocation7], [#allocation6]
    $region9: #{tpu_custom_call.1} parent=1 // pred_fallthru
      _
    // Predicated region
    $region10: #{tpu_custom_call.1} parent=1 // pred_check
      _
    $region11: #{tpu_custom_call.1} parent=1 // pred_check_branch
      %33 = sbr.rel (0) target = $region13
    $region12: #{tpu_custom_call.1} parent=1 // pred_region
      %35 = dma.done [#allocation4], 1024
    $region13: #{tpu_custom_call.1} parent=1 // pred_fallthru
      _
    // Predicated region
    $region14: #{tpu_custom_call.1} parent=1 // pred_check
      _
    $region15: #{tpu_custom_call.1} parent=1 // pred_check_branch
      %37 = sbr.rel (0) target = $region17
    $region16: #{tpu_custom_call.1} parent=1 // pred_region
      %39 = dma.done [#allocation6], 16
    $region17: #{tpu_custom_call.1} parent=1 // pred_fallthru
      _
    %40 = sfence
    %p41 = scmp.eq.s32.totalorder 0, 0
    // Predicated region
    $region18: #{tpu_custom_call.1} parent=1 // pred_check
      %p42 = pneg %p41
    $region19: #{tpu_custom_call.1} parent=1 // pred_check_branch
      %44 = sbr.rel (%p42) target = $region21
    $region20: #{tpu_custom_call.1} parent=1 // pred_region
      %vm45 = vcmask 123904
      %46 = vst.msk [vmem:[#allocation2] sm:$0x3] %vm45, 0.0
    $region21: #{tpu_custom_call.1} parent=1 // pred_fallthru
      _
    %v47 = vld [vmem:[#allocation3] sm:$0xff]
    %v48 = vld [vmem:[#allocation3 + $0x8] sm:$0xff]
    %v49 = vld [vmem:[#allocation3 + $0x10] sm:$0xff]
    %v50 = vld [vmem:[#allocation3 + $0x18] sm:$0xff]
    %v51 = vld [vmem:[#allocation3 + $0x20] sm:$0xff]
    %v52 = vld [vmem:[#allocation3 + $0x28] sm:$0xff]
    %v53 = vld [vmem:[#allocation3 + $0x30] sm:$0xff]
    %v54 = vld [vmem:[#allocation3 + $0x38] sm:$0xff]
    %v55 = vld [vmem:[#allocation2] sm:$0x3]
    %v56 = vadd.f32 %v47, %v48
    %57 = vadd.xlane.f32.xlu0 %v56
    %v58 = vpop.xlane.xlu0 %57
    %v59 = vadd.f32 %v49, %v50
    %60 = vadd.xlane.f32.xlu0 %v59
    %v61 = vpop.xlane.xlu0 %60
    %v62 = vadd.f32 %v51, %v52
    %63 = vadd.xlane.f32.xlu0 %v62
    %v64 = vpop.xlane.xlu0 %63
    %v65 = vadd.f32 %v53, %v54
    %66 = vadd.xlane.f32.xlu0 %v65
    %v67 = vpop.xlane.xlu0 %66
    %v72 = vlaneseq
    %v73 = vand.u32 %v72, 127
    %v74 = vperm.slane %v58, %v73
    %v75 = vadd.s32 %v73, 4294967288
    %v76 = vperm.slane %v61, %v75
    %vm77 = vcmask 130112
    %v78 = vsel %vm77, %v76, %v74
    %v79 = vperm.slane %v64, %v73
    %v80 = vperm.slane %v67, %v75
    %v81 = vsel %vm77, %v80, %v79
    %vm82 = vcmask 1041409
    %v83 = vsel %vm82, %v81, %v78
    %v85 = vadd.f32 %v55, %v83
    %vm86 = vcmask 123904
    %87 = vst.msk [vmem:[#allocation2] sm:$0x3] %vm86, %v85
    // Predicated region
    $region22: #{tpu_custom_call.1} parent=1 // pred_check
      %p88 = pneg %p41
    $region23: #{tpu_custom_call.1} parent=1 // pred_check_branch
      %90 = sbr.rel (%p88) target = $region25
    $region24: #{tpu_custom_call.1} parent=1 // pred_region
      %v91 = vld [vmem:[#allocation2] sm:$0x3]
      %v92 = vmul.f32 %v91, 0.00390625
      %94 = vrot.lane.b32.xlu0 %v92, 1
      %v95 = vpop.permute.xlu0 %94
      %vm97 = vcmask 7168
      %v98 = vsel %vm97, 0.0, %v95
      %vm99 = vcmask 138240
      %v100 = vsel %vm99, %v98, 0.0
      %s101 = sld [smem:[#allocation7]]
      %v102 = vstv %s101
      %v103 = vmul.f32 %v102, %v100
      %s104 = sld [smem:[#allocation7 + $0x1]]
      %v105 = vstv %s104
      %v106 = vmul.f32 %v105, %v100
      %108 = vrot.lane.b32.xlu0 %v106, 127
      %v109 = vpop.permute.xlu0 %108
      %v111 = vadd.f32 %v103, %v109
      %s112 = sld [smem:[#allocation7 + $0x2]]
      %v113 = vstv %s112
      %v114 = vmul.f32 %v113, %v100
      %116 = vrot.lane.b32.xlu0 %v114, 126
      %v117 = vpop.permute.xlu0 %116
      %v119 = vadd.f32 %v111, %v117
      %v120 = vxor.u32 %v119, 2147483648
      %v121 = vmul.f32 %v120, 1.442695
      %v122 = vpow.pop %v121
      %v123 = vadd.f32 %v122, 1.0
      %v124 = vrcp.pop %v123
      %v125 = vmul.f32 %v123, %v124
      %v126 = vsub.f32 1.0, %v125
      %v127 = vmul.f32 %v124, %v126
      %v128 = vadd.f32 %v124, %v127
      %vm129 = vweird.f32 %v123
      %vm130 = vweird.f32 %v124
      %vm131 = vmor %vm129, %vm130
      %v132 = vsel %vm131, %v124, %v128
      %v133 = vand.u32 2147483647, %v123
      %vm134 = vcmp.eq.f32.partialorder %v133, 8.507059e+37
      %v135 = vand.u32 %v123, 2147483648
      %v136 = vor.u32 1.1754944e-38, %v135
      %v137 = vsel %vm134, %v136, %v132
      %v138 = vmul.f32 1.0, %v137
      %139 = vst.msk [vmem:[#allocation8] sm:$0x3] %vm86, %v138
    $region25: #{tpu_custom_call.1} parent=1 // pred_fallthru
      _
    // Predicated region
    $region26: #{tpu_custom_call.1} parent=1 // pred_check
      _
    $region27: #{tpu_custom_call.1} parent=1 // pred_check_branch
      %141 = sbr.rel (0) target = $region29
    $region28: #{tpu_custom_call.1} parent=1 // pred_region
      %143 = vsyncadd [#allocation5], 0
      %s145 = sshll.u32 [#allocation8], 4
      %s146 = int_to_ptr.vmem [resolvable:$true] %s145
      %s147 = sshll.u32 %s2, 4
      %s148 = int_to_ptr.hbm [resolvable:$true] %s147
      %150 = dma.vmem_to_hbm [thread:$0]  %s146, 32, %s148, [#allocation5]
    $region29: #{tpu_custom_call.1} parent=1 // pred_fallthru
      _
    // Predicated region
    $region30: #{tpu_custom_call.1} parent=1 // pred_check
      _
    $region31: #{tpu_custom_call.1} parent=1 // pred_check_branch
      %152 = sbr.rel (0) target = $region33
    $region32: #{tpu_custom_call.1} parent=1 // pred_region
      %154 = dma.done [#allocation5], 32
    $region33: #{tpu_custom_call.1} parent=1 // pred_fallthru
      _
    %155 = vsyncpa [#allocation4], 1
    %156 = vsyncpa [#allocation5], 1
    %157 = vsyncpa [#allocation6], 1

</llo_original>
